<compile_context>
chip_gen: v7x
topology: tpu7x:2x2x1
jax: 0.10.0
libtpu: 0.0.40
codegen_flags: <defaults>
</compile_context>

<pallas_src>
import functools

import jax
import jax.numpy as jnp
from jax.experimental import pallas as pl
from jax.experimental.pallas import tpu as pltpu


def _nerf_embed_kernel(n_layers):
    def kernel(x_ref, o_ref):
        # x_ref: (1, 2, T) block in VMEM; o_ref: (1, 4*n_layers, T) block.
        x = x_ref[0].astype(jnp.float32)            # (2, T)
        s = jnp.sin(jnp.pi * x)                     # sin(2^0 * pi * x)
        c = jnp.cos(jnp.pi * x)                     # cos(2^0 * pi * x)
        for i in range(n_layers):                   # static unroll (compile-time)
            o_ref[0, 4 * i:4 * i + 2, :] = s.astype(o_ref.dtype)
            o_ref[0, 4 * i + 2:4 * i + 4, :] = c.astype(o_ref.dtype)
            if i + 1 < n_layers:
                # Double-angle recurrence: arg_{i+1} = 2 * arg_i.
                s, c = 2.0 * s * c, 1.0 - 2.0 * s * s
    return kernel


@functools.partial(jax.jit,
                   static_argnames=("n_layers", "lanes_per_block", "out_dtype"))
def nerf_embedding(spatial_coords, n_layers: int = 5, *,
                   lanes_per_block: int = 32768, out_dtype=jnp.float32):
    """Pallas implementation of NeRF_embedding.forward.

    Args:
        spatial_coords: [B, 2, H, W] array (any float dtype; cast in-kernel).
        n_layers: number of frequency octaves.
        lanes_per_block: spatial elements per grid step (rounded to 128).
        out_dtype: output dtype (fp32 matches the PyTorch reference; bf16
            halves HBM writeback if the consumer tolerates it).
    Returns:
        [B, n_layers*4, H, W] array of `out_dtype`.
    """
    B, C, H, W = spatial_coords.shape
    assert C == 2, "NeRF_embedding expects 2 input channels (x, y coords)"
    out_c = 4 * n_layers
    hw = H * W

    # Lane-dense layout: flatten spatial dims (free reshape of contiguous NCHW).
    x_flat = spatial_coords.reshape(B, C, hw)

    # Block size: multiple of 128 lanes.  A ragged tail (hw % T != 0) is
    # handled by Pallas' OOB masking on the last spatial block (reads of the
    # pad lanes are garbage but their writes are discarded).
    t = min(max(lanes_per_block, 128), pl.cdiv(hw, 128) * 128)
    t = (t // 128) * 128
    grid = (B, pl.cdiv(hw, t))

    out_flat = pl.pallas_call(
        _nerf_embed_kernel(n_layers),
        out_shape=jax.ShapeDtypeStruct((B, out_c, hw), out_dtype),
        grid_spec=pltpu.PrefetchScalarGridSpec(
            num_scalar_prefetch=0,
            grid=grid,
            in_specs=[pl.BlockSpec((1, C, t), lambda b, sblk: (b, 0, sblk))],
            out_specs=pl.BlockSpec((1, out_c, t), lambda b, sblk: (b, 0, sblk)),
        ),
        compiler_params=pltpu.CompilerParams(
            dimension_semantics=("parallel", "parallel"),
        ),
    )(x_flat)

    return out_flat.reshape(B, out_c, H, W)


def nerf_embedding_ref(spatial_coords, n_layers: int = 5):
    """Pure-JAX reference matching the PyTorch forward exactly."""
    x = spatial_coords.astype(jnp.float32)
    embs = []
    for i in range(n_layers):
        arg = (2.0 ** i) * jnp.pi * x
        embs.append(jnp.sin(arg))
        embs.append(jnp.cos(arg))
    return jnp.concatenate(embs, axis=1)


if __name__ == "__main__":
    key = jax.random.PRNGKey(0)
    B, C, H, W = 2, 2, 16, 16  # module expects 2 spatial-coordinate channels
    x = jax.random.uniform(key, (B, C, H, W), dtype=jnp.float32)

    out = jax.block_until_ready(nerf_embedding(x, n_layers=5))
    ref = nerf_embedding_ref(x, n_layers=5)

    assert out.shape == (B, 20, H, W), out.shape
    # Double-angle recurrence accumulates a tiny amount of fp32 error per
    # octave (worst case ~4e-5 for n_layers=5); real bugs would be O(1).
    err = float(jnp.max(jnp.abs(out.astype(jnp.float32) - ref)))
    assert err < 5e-4, f"mismatch vs reference: max abs err {err}"

    # Exercise the spatial grid axis (multiple lane blocks per batch element).
    out_multi = jax.block_until_ready(
        nerf_embedding(x, n_layers=5, lanes_per_block=128))
    err_multi = float(jnp.max(jnp.abs(out_multi.astype(jnp.float32) - ref)))
    assert err_multi < 5e-4, f"mismatch (tiled) vs reference: max abs err {err_multi}"

    print("KERNEL_OK")
</pallas_src>

<mosaic_0001>
module attributes {stable_mosaic.version = 11 : i64} {
  func.func @kernel(%arg0: i32, %arg1: i32, %arg2: memref<1x2x256xf32, #tpu.memory_space<vmem>>, %arg3: memref<1x20x256xf32, #tpu.memory_space<vmem>>) attributes {dimension_semantics = [#tpu.dimension_semantics<parallel>, #tpu.dimension_semantics<parallel>], iteration_bounds = array<i64: 2, 1>, scalar_prefetch = 0 : i64, scratch_operands = 0 : i64, tpu.core_type = #tpu.core_type<tc>, window_params = [{transform_indices = @transform_0, window_bounds = array<i64: 1, 2, 256>}, {transform_indices = @transform_1, window_bounds = array<i64: 1, 20, 256>}]} {
    %c0 = arith.constant 0 : index
    %c0_0 = arith.constant 0 : index
    %c0_1 = arith.constant 0 : index
    %0 = vector.load %arg2[%c0, %c0_0, %c0_1] : memref<1x2x256xf32, #tpu.memory_space<vmem>>, vector<1x2x256xf32>
    %1 = vector.shape_cast %0 : vector<1x2x256xf32> to vector<2x256xf32>
    %cst = arith.constant 3.14159274 : f32
    %2 = vector.broadcast %cst : f32 to vector<2x256xf32>
    %3 = arith.mulf %2, %1 : vector<2x256xf32>
    %4 = math.sin %3 : vector<2x256xf32>
    %cst_2 = arith.constant 3.14159274 : f32
    %5 = vector.broadcast %cst_2 : f32 to vector<2x256xf32>
    %6 = arith.mulf %5, %1 : vector<2x256xf32>
    %7 = math.cos %6 : vector<2x256xf32>
    %c0_3 = arith.constant 0 : index
    %c0_4 = arith.constant 0 : index
    %c0_5 = arith.constant 0 : index
    %8 = vector.load %arg3[%c0_3, %c0_4, %c0_5] : memref<1x20x256xf32, #tpu.memory_space<vmem>>, vector<1x2x256xf32>
    %9 = vector.shape_cast %8 : vector<1x2x256xf32> to vector<2x256xf32>
    %10 = vector.shape_cast %4 : vector<2x256xf32> to vector<1x2x256xf32>
    tpu.vector_store %arg3[%c0_3, %c0_4, %c0_5], %10 {strides = array<i32>} : memref<1x20x256xf32, #tpu.memory_space<vmem>>, vector<1x2x256xf32>,
    %c0_6 = arith.constant 0 : index
    %c2 = arith.constant 2 : index
    %c0_7 = arith.constant 0 : index
    %11 = vector.load %arg3[%c0_6, %c2, %c0_7] : memref<1x20x256xf32, #tpu.memory_space<vmem>>, vector<1x2x256xf32>
    %12 = vector.shape_cast %11 : vector<1x2x256xf32> to vector<2x256xf32>
    %13 = vector.shape_cast %7 : vector<2x256xf32> to vector<1x2x256xf32>
    tpu.vector_store %arg3[%c0_6, %c2, %c0_7], %13 {strides = array<i32>} : memref<1x20x256xf32, #tpu.memory_space<vmem>>, vector<1x2x256xf32>,
    %cst_8 = arith.constant 2.000000e+00 : f32
    %14 = vector.broadcast %cst_8 : f32 to vector<2x256xf32>
    %15 = arith.mulf %14, %4 : vector<2x256xf32>
    %16 = arith.mulf %15, %7 : vector<2x256xf32>
    %cst_9 = arith.constant 2.000000e+00 : f32
    %17 = vector.broadcast %cst_9 : f32 to vector<2x256xf32>
    %18 = arith.mulf %17, %4 : vector<2x256xf32>
    %19 = arith.mulf %18, %4 : vector<2x256xf32>
    %cst_10 = arith.constant 1.000000e+00 : f32
    %20 = vector.broadcast %cst_10 : f32 to vector<2x256xf32>
    %21 = arith.subf %20, %19 : vector<2x256xf32>
    %c0_11 = arith.constant 0 : index
    %c4 = arith.constant 4 : index
    %c0_12 = arith.constant 0 : index
    %22 = vector.load %arg3[%c0_11, %c4, %c0_12] : memref<1x20x256xf32, #tpu.memory_space<vmem>>, vector<1x2x256xf32>
    %23 = vector.shape_cast %22 : vector<1x2x256xf32> to vector<2x256xf32>
    %24 = vector.shape_cast %16 : vector<2x256xf32> to vector<1x2x256xf32>
    tpu.vector_store %arg3[%c0_11, %c4, %c0_12], %24 {strides = array<i32>} : memref<1x20x256xf32, #tpu.memory_space<vmem>>, vector<1x2x256xf32>,
    %c0_13 = arith.constant 0 : index
    %c6 = arith.constant 6 : index
    %c0_14 = arith.constant 0 : index
    %25 = vector.load %arg3[%c0_13, %c6, %c0_14] : memref<1x20x256xf32, #tpu.memory_space<vmem>>, vector<1x2x256xf32>
    %26 = vector.shape_cast %25 : vector<1x2x256xf32> to vector<2x256xf32>
    %27 = vector.shape_cast %21 : vector<2x256xf32> to vector<1x2x256xf32>
    tpu.vector_store %arg3[%c0_13, %c6, %c0_14], %27 {strides = array<i32>} : memref<1x20x256xf32, #tpu.memory_space<vmem>>, vector<1x2x256xf32>,
    %cst_15 = arith.constant 2.000000e+00 : f32
    %28 = vector.broadcast %cst_15 : f32 to vector<2x256xf32>
    %29 = arith.mulf %28, %16 : vector<2x256xf32>
    %30 = arith.mulf %29, %21 : vector<2x256xf32>
    %cst_16 = arith.constant 2.000000e+00 : f32
    %31 = vector.broadcast %cst_16 : f32 to vector<2x256xf32>
    %32 = arith.mulf %31, %16 : vector<2x256xf32>
    %33 = arith.mulf %32, %16 : vector<2x256xf32>
    %cst_17 = arith.constant 1.000000e+00 : f32
    %34 = vector.broadcast %cst_17 : f32 to vector<2x256xf32>
    %35 = arith.subf %34, %33 : vector<2x256xf32>
    %c0_18 = arith.constant 0 : index
    %c8 = arith.constant 8 : index
    %c0_19 = arith.constant 0 : index
    %36 = vector.load %arg3[%c0_18, %c8, %c0_19] : memref<1x20x256xf32, #tpu.memory_space<vmem>>, vector<1x2x256xf32>
    %37 = vector.shape_cast %36 : vector<1x2x256xf32> to vector<2x256xf32>
    %38 = vector.shape_cast %30 : vector<2x256xf32> to vector<1x2x256xf32>
    tpu.vector_store %arg3[%c0_18, %c8, %c0_19], %38 {strides = array<i32>} : memref<1x20x256xf32, #tpu.memory_space<vmem>>, vector<1x2x256xf32>,
    %c0_20 = arith.constant 0 : index
    %c10 = arith.constant 10 : index
    %c0_21 = arith.constant 0 : index
    %39 = vector.load %arg3[%c0_20, %c10, %c0_21] : memref<1x20x256xf32, #tpu.memory_space<vmem>>, vector<1x2x256xf32>
    %40 = vector.shape_cast %39 : vector<1x2x256xf32> to vector<2x256xf32>
    %41 = vector.shape_cast %35 : vector<2x256xf32> to vector<1x2x256xf32>
    tpu.vector_store %arg3[%c0_20, %c10, %c0_21], %41 {strides = array<i32>} : memref<1x20x256xf32, #tpu.memory_space<vmem>>, vector<1x2x256xf32>,
    %cst_22 = arith.constant 2.000000e+00 : f32
    %42 = vector.broadcast %cst_22 : f32 to vector<2x256xf32>
    %43 = arith.mulf %42, %30 : vector<2x256xf32>
    %44 = arith.mulf %43, %35 : vector<2x256xf32>
    %cst_23 = arith.constant 2.000000e+00 : f32
    %45 = vector.broadcast %cst_23 : f32 to vector<2x256xf32>
    %46 = arith.mulf %45, %30 : vector<2x256xf32>
    %47 = arith.mulf %46, %30 : vector<2x256xf32>
    %cst_24 = arith.constant 1.000000e+00 : f32
    %48 = vector.broadcast %cst_24 : f32 to vector<2x256xf32>
    %49 = arith.subf %48, %47 : vector<2x256xf32>
    %c0_25 = arith.constant 0 : index
    %c12 = arith.constant 12 : index
    %c0_26 = arith.constant 0 : index
    %50 = vector.load %arg3[%c0_25, %c12, %c0_26] : memref<1x20x256xf32, #tpu.memory_space<vmem>>, vector<1x2x256xf32>
    %51 = vector.shape_cast %50 : vector<1x2x256xf32> to vector<2x256xf32>
    %52 = vector.shape_cast %44 : vector<2x256xf32> to vector<1x2x256xf32>
    tpu.vector_store %arg3[%c0_25, %c12, %c0_26], %52 {strides = array<i32>} : memref<1x20x256xf32, #tpu.memory_space<vmem>>, vector<1x2x256xf32>,
    %c0_27 = arith.constant 0 : index
    %c14 = arith.constant 14 : index
    %c0_28 = arith.constant 0 : index
    %53 = vector.load %arg3[%c0_27, %c14, %c0_28] : memref<1x20x256xf32, #tpu.memory_space<vmem>>, vector<1x2x256xf32>
    %54 = vector.shape_cast %53 : vector<1x2x256xf32> to vector<2x256xf32>
    %55 = vector.shape_cast %49 : vector<2x256xf32> to vector<1x2x256xf32>
    tpu.vector_store %arg3[%c0_27, %c14, %c0_28], %55 {strides = array<i32>} : memref<1x20x256xf32, #tpu.memory_space<vmem>>, vector<1x2x256xf32>,
    %cst_29 = arith.constant 2.000000e+00 : f32
    %56 = vector.broadcast %cst_29 : f32 to vector<2x256xf32>
    %57 = arith.mulf %56, %44 : vector<2x256xf32>
    %58 = arith.mulf %57, %49 : vector<2x256xf32>
    %cst_30 = arith.constant 2.000000e+00 : f32
    %59 = vector.broadcast %cst_30 : f32 to vector<2x256xf32>
    %60 = arith.mulf %59, %44 : vector<2x256xf32>
    %61 = arith.mulf %60, %44 : vector<2x256xf32>
    %cst_31 = arith.constant 1.000000e+00 : f32
    %62 = vector.broadcast %cst_31 : f32 to vector<2x256xf32>
    %63 = arith.subf %62, %61 : vector<2x256xf32>
    %c0_32 = arith.constant 0 : index
    %c16 = arith.constant 16 : index
    %c0_33 = arith.constant 0 : index
    %64 = vector.load %arg3[%c0_32, %c16, %c0_33] : memref<1x20x256xf32, #tpu.memory_space<vmem>>, vector<1x2x256xf32>
    %65 = vector.shape_cast %64 : vector<1x2x256xf32> to vector<2x256xf32>
    %66 = vector.shape_cast %58 : vector<2x256xf32> to vector<1x2x256xf32>
    tpu.vector_store %arg3[%c0_32, %c16, %c0_33], %66 {strides = array<i32>} : memref<1x20x256xf32, #tpu.memory_space<vmem>>, vector<1x2x256xf32>,
    %c0_34 = arith.constant 0 : index
    %c18 = arith.constant 18 : index
    %c0_35 = arith.constant 0 : index
    %67 = vector.load %arg3[%c0_34, %c18, %c0_35] : memref<1x20x256xf32, #tpu.memory_space<vmem>>, vector<1x2x256xf32>
    %68 = vector.shape_cast %67 : vector<1x2x256xf32> to vector<2x256xf32>
    %69 = vector.shape_cast %63 : vector<2x256xf32> to vector<1x2x256xf32>
    tpu.vector_store %arg3[%c0_34, %c18, %c0_35], %69 {strides = array<i32>} : memref<1x20x256xf32, #tpu.memory_space<vmem>>, vector<1x2x256xf32>,
    return
  }
  func.func @transform_0(%arg0: i32, %arg1: i32) -> (i32, i32, i32) {
    %c0_i32 = arith.constant 0 : i32
    %c0_i32_0 = arith.constant 0 : i32
    return %arg0, %c0_i32, %arg1 : i32, i32, i32
  }
  func.func @transform_1(%arg0: i32, %arg1: i32) -> (i32, i32, i32) {
    %c0_i32 = arith.constant 0 : i32
    %c0_i32_0 = arith.constant 0 : i32
    return %arg0, %c0_i32, %arg1 : i32, i32, i32
  }
}

</mosaic_0001>

<llo_original>
// kernel: nerf_embedding.1
$region0: #{nerf_embedding.1}
  #allocation0 [shape = 'u32[]', space=smem, size = 0x4, offset = 0x4, fixed_abs, tag = 'smem constant byte address 0x4 - core index']
  #allocation1 [shape = 'u32[144,128]{1,0:T(1,128)}', space=vmem, size = 0x12000, scoped, tag = 'internal scratch']
  %s0 = inlined_call_operand.vmem [shape: f32[2,2,256], index: 0, kind: input, shape index: {}]
  %s1 = inlined_call_operand.vmem [shape: f32[2,20,256], index: 1, kind: output, shape index: {}]
  %s2 = sld [smem:[#allocation0]]
  $region37: #{nerf_embedding.1} parent=0
    _
  %s4 = ssub.s32 1, %s2
  %s5 = scalar_select 0, %s4, %s2
  loop: start=0, step=1, limit=4
  $region2: #{nerf_embedding.1} parent=0 // loop_pre_header
    _
  $region3: #{nerf_embedding.1} parent=0 // loop_header
    %s7 = sphi 0, %s11
    %p8 = scmp.ge.s32.totalorder %s7, 4
    %s14 = sphi 0, %s26
    %s15 = sphi 0, %s22
    %s16 = sphi 0, %s14
    %s17 = sphi 0, %s15
    %s18 = sphi 0, %s16
    %s19 = sphi 0, %s17
    %s31 = sphi 0, %s33
    %s34 = sphi 0, %s31
    %s35 = sphi 0, %s34
    %s51 = sphi 0, %s35
    %s59 = sphi 0, %s61
    %s62 = sphi 0, %s59
    %s63 = sphi 0, %s62
    %s79 = sphi 0, %s63
  $region4: #{nerf_embedding.1} parent=0 // loop_header_branch
    %10 = sbr.rel (%p8) target = $region8
  $region5: #{nerf_embedding.1} parent=0 // loop_body
    %s12 = ssub.s32 %s7, 1
    %s13 = ssub.s32 %s7, 2
    %s20 = sadd.s32 1, %s15
    %p21 = scmp.ge.s32.totalorder %s20, 1
    %s22 = scalar_select %p21, 0, %s20
    %s23 = sadd.s32 1, %s14
    %s24 = scalar_select %p21, %s23, %s14
    %p25 = scmp.ge.s32.totalorder %s24, 2
    %s26 = scalar_select %p25, 0, %s24
    %s27 = ssub.s32 %s14, %s26
    %s28 = ssub.s32 %s15, %s22
    %s29 = sor.u32 %s27, %s28
    %p30 = scmp.eq.s32.totalorder %s29, 0
    %s32 = sadd.s32 %s31, 1
    %s33 = scalar_select %p30, %s31, %s32
    %p36 = pneg %p30
    %p37 = scmp.eq.s32.totalorder %s7, 1
    %p38 = por %p36, %p37
    %p39 = scmp.ne.s32.totalorder %s31, %s34
    %p40 = scmp.eq.s32.totalorder %s7, 0
    %p41 = por %p39, %p40
    %p42 = scmp.ne.s32.totalorder %s31, %s34
    %p43 = scmp.eq.s32.totalorder %s12, 1
    %p44 = por %p42, %p43
    %p45 = scmp.ne.s32.totalorder %s34, %s35
    %p46 = scmp.eq.s32.totalorder %s12, 0
    %p47 = por %p45, %p46
    %p48 = scmp.ne.s32.totalorder %s34, %s35
    %p49 = scmp.eq.s32.totalorder %s13, 1
    %p50 = por %p48, %p49
    %p52 = scmp.ne.s32.totalorder %s35, %s51
    %p53 = scmp.eq.s32.totalorder %s13, 0
    %p54 = por %p52, %p53
    %s55 = ssub.s32 %s14, %s26
    %s56 = ssub.s32 %s15, %s22
    %s57 = sor.u32 %s55, %s56
    %p58 = scmp.eq.s32.totalorder %s57, 0
    %s60 = sadd.s32 %s59, 1
    %s61 = scalar_select %p58, %s59, %s60
    %p64 = pneg %p58
    %p65 = scmp.eq.s32.totalorder %s7, 1
    %p66 = por %p64, %p65
    %p67 = scmp.ne.s32.totalorder %s59, %s62
    %p68 = scmp.eq.s32.totalorder %s7, 0
    %p69 = por %p67, %p68
    %p70 = scmp.ne.s32.totalorder %s59, %s62
    %p71 = scmp.eq.s32.totalorder %s12, 1
    %p72 = por %p70, %p71
    %p73 = scmp.ne.s32.totalorder %s62, %s63
    %p74 = scmp.eq.s32.totalorder %s12, 0
    %p75 = por %p73, %p74
    %p76 = scmp.ne.s32.totalorder %s62, %s63
    %p77 = scmp.eq.s32.totalorder %s13, 1
    %p78 = por %p76, %p77
    %p80 = scmp.ne.s32.totalorder %s63, %s79
    %p81 = scmp.eq.s32.totalorder %s13, 0
    %p82 = por %p80, %p81
    %p83 = scmp.le.s32.totalorder 1, %s7
    %p84 = scmp.lt.s32.totalorder %s7, 3
    %p85 = pnand %p83, %p84
    %p86 = pneg %p85
    // Predicated region
    $region9: #{nerf_embedding.1} parent=5 // pred_check
      _
    $region10: #{nerf_embedding.1} parent=5 // pred_check_branch
      %88 = sbr.rel (%p85) target = $region12
    $region11: #{nerf_embedding.1} parent=5 // pred_region
      %s89 = ssub.s32 %s7, 1
    $region12: #{nerf_embedding.1} parent=5 // pred_fallthru
      _
    %p90 = scmp.lt.s32.totalorder %s7, 2
    // Predicated region
    $region13: #{nerf_embedding.1} parent=5 // pred_check
      %p91 = pneg %p90
    $region14: #{nerf_embedding.1} parent=5 // pred_check_branch
      %93 = sbr.rel (%p91) target = $region16
    $region15: #{nerf_embedding.1} parent=5 // pred_region
      // Predicated region
      $region17: #{nerf_embedding.1} parent=15 // pred_check
        %p94 = pneg %p41
      $region18: #{nerf_embedding.1} parent=15 // pred_check_branch
        %96 = sbr.rel (%p94) target = $region20
      $region19: #{nerf_embedding.1} parent=15 // pred_region
        %s97 = smul.u32 2, %s15
        %p98 = scmp.lt.s32.totalorder %s14, 1
        %s99 = scalar_select %p98, %s14, 1
        %p100 = scmp.lt.s32.totalorder %s97, 1
        %s101 = scalar_select %p100, %s97, 1
        %s102 = smul.addr %s99, 2
        %s103 = sadd.s32 %s101, %s102
        %s104 = smul.addr %s103, 2
        %s105 = scalar_lea.vmem %s0, %s104
        %s106 = smul.u32 2, %s15
      $region20: #{nerf_embedding.1} parent=15 // pred_fallthru
        _
    $region16: #{nerf_embedding.1} parent=5 // pred_fallthru
      _
    %p107 = scmp.le.s32.totalorder 1, %s7
    %p108 = scmp.lt.s32.totalorder %s7, 3
    %p109 = pnand %p107, %p108
    %p110 = pneg %p109
    // Predicated region
    $region21: #{nerf_embedding.1} parent=5 // pred_check
      _
    $region22: #{nerf_embedding.1} parent=5 // pred_check_branch
      %112 = sbr.rel (%p109) target = $region24
    $region23: #{nerf_embedding.1} parent=5 // pred_region
      %s113 = ssub.s32 %s7, 1
      %s114 = smul.u32 2, %s17
      %p115 = scmp.lt.s32.totalorder %s16, 1
      %s116 = scalar_select %p115, %s16, 1
      %p117 = scmp.lt.s32.totalorder %s114, 1
      %s118 = scalar_select %p117, %s114, 1
      %s119 = smul.addr %s116, 2
      %s120 = sadd.s32 %s118, %s119
      %s121 = smul.addr %s120, 2
      %s122 = scalar_lea.vmem %s0, %s121
      %p123 = pneg %p47
      %p124 = pneg %p44
      %p125 = pneg %p75
      %p126 = pneg %p72
      %s127 = smul.u32 2, %s17
      %p128 = scmp.lt.s32.totalorder %s16, 1
      %s129 = scalar_select %p128, %s16, 1
      %p130 = scmp.lt.s32.totalorder %s127, 1
      %s131 = scalar_select %p130, %s127, 1
      %s132 = smul.addr %s129, 6
      %s133 = sadd.s32 %s131, %s132
      %s134 = smul.addr %s133, 8
      %s135 = scalar_lea.vmem %s1, %s134
      %s136 = smul.u32 2, %s17
      %p137 = scmp.lt.s32.totalorder %s16, 1
      %s138 = scalar_select %p137, %s16, 1
      %p139 = scmp.lt.s32.totalorder %s136, 1
      %s140 = scalar_select %p139, %s136, 1
      %s141 = smul.addr %s138, 2
      %s142 = sadd.s32 %s140, %s141
      %s143 = smul.addr %s142, 2
      %s144 = scalar_lea.vmem %s0, %s143
      %s145 = smul.u32 2, %s17
      %s146 = smul.u32 2, %s17
      %p147 = scmp.lt.s32.totalorder %s16, 1
      %s148 = scalar_select %p147, %s16, 1
      %p149 = scmp.lt.s32.totalorder %s146, 1
      %s150 = scalar_select %p149, %s146, 1
      %s151 = smul.addr %s148, 6
      %s152 = sadd.s32 %s150, %s151
      %s153 = smul.addr %s152, 8
      %s154 = scalar_lea.vmem %s1, %s153
      %s155 = smul.u32 2, %s17
      %v156 = vld [vmem:[%s144] sm:$0xf]
      %v157 = vmul.f32 %v156, 3.1415927
      %v158 = vand.u32 2147483647, %v157
      %vm159 = vcmp.le.f32.partialorder %v158, 0.7853982
      %vm160 = vcmp.lt.s32.totalorder %v157, 0
      %v161 = vand.u32 %v157, 2139095040
      %v162 = vshrl.u32 %v161, 23
      %v163 = vsub.s32 %v162, 127
      %v164 = vand.u32 2147483647, %v157
      %v165 = vand.u32 %v164, 8388607
      %v166 = vor.u32 %v165, 8388608
      %v167 = vsub.s32 0, %v166
      %v168 = vadd.s32 %v163, 1
      %vm169 = vcmp.gt.s32.totalorder %v168, 0
      %v170 = vsel %vm169, %v168, 0
      %v171 = vshrl.u32 %v170, 5
      %v172 = vand.u32 %v170, 31
      %v173 = vsub.s32 32, %v172
      %v174 = vshrl.u32 683565275, %v173
      %v175 = vshll.u32 683565275, %v172
      %v176 = vshrl.u32 2475754826, %v173
      %v177 = vor.u32 %v175, %v176
      %v178 = vshll.u32 2475754826, %v172
      %v179 = vshrl.u32 2131351028, %v173
      %v180 = vor.u32 %v178, %v179
      %v181 = vshll.u32 2131351028, %v172
      %v182 = vshrl.u32 2102212464, %v173
      %v183 = vor.u32 %v181, %v182
      %v184 = vshll.u32 2102212464, %v172
      %v185 = vshrl.u32 920167782, %v173
      %v186 = vor.u32 %v184, %v185
      %v187 = vshll.u32 920167782, %v172
      %v188 = vshrl.u32 1326507024, %v173
      %v189 = vor.u32 %v187, %v188
      %vm190 = vcmp.lt.s32.totalorder %v171, 1
      %vm191 = vcmp.lt.s32.totalorder %v171, 2
      %vm192 = vcmp.lt.s32.totalorder %v171, 3
      %vm193 = vcmp.lt.s32.totalorder %v171, 4
      %v194 = vsel %vm190, %v174, %v177
      %v195 = vsel %vm193, %v183, 2102212464
      %v196 = vsel %vm192, %v180, %v195
      %v197 = vsel %vm191, %v194, %v196
      %v198 = vsel %vm190, %v177, %v180
      %v199 = vsel %vm193, %v186, 920167782
      %v200 = vsel %vm192, %v183, %v199
      %v201 = vsel %vm191, %v198, %v200
      %v202 = vsel %vm190, %v180, %v183
      %v203 = vsel %vm193, %v189, 1326507024
      %v204 = vsel %vm192, %v186, %v203
      %v205 = vsel %vm191, %v202, %v204
      %v206 = vshll.u32 %v166, 8
      %v207 = vmul.u32.u64.compose %v206, %v205
      %v208 = vextract.low.u32 %v207
      %v209 = vextract.high.u32 %v207
      %v210 = vmul.u32.u64.compose %v206, %v201
      %v211 = vextract.low.u32 %v210
      %v212 = vextract.high.u32 %v210
      %v213 = vmul.u32 %v206, %v197
      %v214 = vadd.s32 %v209, %v211
      %vm215 = vc.u32 %v209, %v211
      %v216 = vadd.s32 %v212, 1
      %v217 = vsel %vm215, %v216, %v212
      %v218 = vadd.s32 %v213, %v217
      %v219 = vadd.s32 %v218, 536870912
      %v220 = vshrl.u32 %v219, 30
      %v221 = vshll.u32 %v220, 30
      %v222 = vsub.s32 %v218, %v221
      %vm223 = vcmp.lt.s32.totalorder %v222, 0
      %v224 = vsub.s32 0, %v222
      %v225 = vsel %vm223, %v224, %v222
      %v226 = vclz %v225
      %v227 = vsub.s32 %v226, 2
      %vm228 = vcmp.gt.s32.totalorder 0, %v227
      %v229 = vsel %vm228, 0, %v227
      %v230 = vsub.s32 32, %v229
      %v231 = vshll.u32 %v222, %v229
      %v232 = vshrl.u32 %v214, %v230
      %v233 = vor.u32 %v231, %v232
      %v234 = vsub.s32 4294967266, %v229
      %v235 = vadd.s32 %v234, 127
      %v236 = vshll.u32 %v235, 23
      %v237 = vor.u32 4788187, %v236
      %v238 = vand.u32 2147483647, %v237
      %v240 = vcvt.s32.f32 %v233
      %v241 = vmul.f32 %v240, %v238
      %v242 = vxor.u32 %v241, 2147483648
      %v243 = vsel %vm160, %v242, %v241
      %v244 = vsub.s32 4, %v220
      %v245 = vsel %vm160, %v244, %v220
      %v246 = vsel %vm159, %v157, %v243
      %v247 = vsel %vm159, 0, %v245
      %v248 = vcosq.f32.pop %v246
      %v249 = vsinq.f32.pop %v246
      %vm250 = vweird.f32 %v157
      %v251 = vadd.s32 %v247, 3
      %v252 = vand.u32 %v251, 3
      %vm253 = vcmp.lt.s32.totalorder %v252, 2
      %vm254 = vcmp.eq.s32.totalorder %v252, 0
      %v255 = vxor.u32 %v249, 2147483648
      %v256 = vsel %vm254, %v248, %v255
      %vm257 = vcmp.eq.s32.totalorder %v252, 2
      %v258 = vxor.u32 %v248, 2147483648
      %v259 = vsel %vm257, %v258, %v249
      %v260 = vsel %vm253, %v256, %v259
      %v261 = vsel %vm250, nan, %v260
      %v262 = vand.u32 2147483647, %v157
      %vm263 = vcmp.le.f32.partialorder %v262, 0.7853982
      %vm264 = vcmp.lt.s32.totalorder %v157, 0
      %v265 = vand.u32 %v157, 2139095040
      %v266 = vshrl.u32 %v265, 23
      %v267 = vsub.s32 %v266, 127
      %v268 = vand.u32 2147483647, %v157
      %v269 = vand.u32 %v268, 8388607
      %v270 = vor.u32 %v269, 8388608
      %v271 = vsub.s32 0, %v270
      %v272 = vadd.s32 %v267, 1
      %vm273 = vcmp.gt.s32.totalorder %v272, 0
      %v274 = vsel %vm273, %v272, 0
      %v275 = vshrl.u32 %v274, 5
      %v276 = vand.u32 %v274, 31
      %v277 = vsub.s32 32, %v276
      %v278 = vshrl.u32 683565275, %v277
      %v279 = vshll.u32 683565275, %v276
      %v280 = vshrl.u32 2475754826, %v277
      %v281 = vor.u32 %v279, %v280
      %v282 = vshll.u32 2475754826, %v276
      %v283 = vshrl.u32 2131351028, %v277
      %v284 = vor.u32 %v282, %v283
      %v285 = vshll.u32 2131351028, %v276
      %v286 = vshrl.u32 2102212464, %v277
      %v287 = vor.u32 %v285, %v286
      %v288 = vshll.u32 2102212464, %v276
      %v289 = vshrl.u32 920167782, %v277
      %v290 = vor.u32 %v288, %v289
      %v291 = vshll.u32 920167782, %v276
      %v292 = vshrl.u32 1326507024, %v277
      %v293 = vor.u32 %v291, %v292
      %vm294 = vcmp.lt.s32.totalorder %v275, 1
      %vm295 = vcmp.lt.s32.totalorder %v275, 2
      %vm296 = vcmp.lt.s32.totalorder %v275, 3
      %vm297 = vcmp.lt.s32.totalorder %v275, 4
      %v298 = vsel %vm294, %v278, %v281
      %v299 = vsel %vm297, %v287, 2102212464
      %v300 = vsel %vm296, %v284, %v299
      %v301 = vsel %vm295, %v298, %v300
      %v302 = vsel %vm294, %v281, %v284
      %v303 = vsel %vm297, %v290, 920167782
      %v304 = vsel %vm296, %v287, %v303
      %v305 = vsel %vm295, %v302, %v304
      %v306 = vsel %vm294, %v284, %v287
      %v307 = vsel %vm297, %v293, 1326507024
      %v308 = vsel %vm296, %v290, %v307
      %v309 = vsel %vm295, %v306, %v308
      %v310 = vshll.u32 %v270, 8
      %v311 = vmul.u32.u64.compose %v310, %v309
      %v312 = vextract.low.u32 %v311
      %v313 = vextract.high.u32 %v311
      %v314 = vmul.u32.u64.compose %v310, %v305
      %v315 = vextract.low.u32 %v314
      %v316 = vextract.high.u32 %v314
      %v317 = vmul.u32 %v310, %v301
      %v318 = vadd.s32 %v313, %v315
      %vm319 = vc.u32 %v313, %v315
      %v320 = vadd.s32 %v316, 1
      %v321 = vsel %vm319, %v320, %v316
      %v322 = vadd.s32 %v317, %v321
      %v323 = vadd.s32 %v322, 536870912
      %v324 = vshrl.u32 %v323, 30
      %v325 = vshll.u32 %v324, 30
      %v326 = vsub.s32 %v322, %v325
      %vm327 = vcmp.lt.s32.totalorder %v326, 0
      %v328 = vsub.s32 0, %v326
      %v329 = vsel %vm327, %v328, %v326
      %v330 = vclz %v329
      %v331 = vsub.s32 %v330, 2
      %vm332 = vcmp.gt.s32.totalorder 0, %v331
      %v333 = vsel %vm332, 0, %v331
      %v334 = vsub.s32 32, %v333
      %v335 = vshll.u32 %v326, %v333
      %v336 = vshrl.u32 %v318, %v334
      %v337 = vor.u32 %v335, %v336
      %v338 = vsub.s32 4294967266, %v333
      %v339 = vadd.s32 %v338, 127
      %v340 = vshll.u32 %v339, 23
      %v341 = vor.u32 4788187, %v340
      %v342 = vand.u32 2147483647, %v341
      %v344 = vcvt.s32.f32 %v337
      %v345 = vmul.f32 %v344, %v342
      %v346 = vxor.u32 %v345, 2147483648
      %v347 = vsel %vm264, %v346, %v345
      %v348 = vsub.s32 4, %v324
      %v349 = vsel %vm264, %v348, %v324
      %v350 = vsel %vm263, %v157, %v347
      %v351 = vsel %vm263, 0, %v349
      %v352 = vcosq.f32.pop %v350
      %v353 = vsinq.f32.pop %v350
      %vm354 = vweird.f32 %v157
      %v355 = vand.u32 %v351, 3
      %vm356 = vcmp.lt.s32.totalorder %v355, 2
      %vm357 = vcmp.eq.s32.totalorder %v355, 0
      %v358 = vxor.u32 %v353, 2147483648
      %v359 = vsel %vm357, %v352, %v358
      %vm360 = vcmp.eq.s32.totalorder %v355, 2
      %v361 = vxor.u32 %v352, 2147483648
      %v362 = vsel %vm360, %v361, %v353
      %v363 = vsel %vm356, %v359, %v362
      %v364 = vsel %vm354, nan, %v363
      %v367 = vunpack.c.l.s4 1983009808
      %v368 = vunpack.c.0.s8 %v367
      %v369 = vlaneseq
      %v370 = vshrl.u32 %v369, 7
      %v371 = vsub.s32 %v368, %v370
      %v372 = vrot.slane %v261, %v371
      %v373 = vcombine.high %v372, %v372
      %376 = vst [vmem:[%s154] sm:$0x3] %v372
      %377 = vst [vmem:[%s154 + $0x8] sm:$0x3] %v373
      %v379 = vcombine.low %v364, %v364
      %v381 = vunpack.c.l.s4 1983009808
      %v382 = vunpack.c.0.s8 %v381
      %v383 = vlaneseq
      %v384 = vshrl.u32 %v383, 7
      %v385 = vsub.s32 %v382, %v384
      %v386 = vrot.slane %v379, %v385
      %v387 = vcombine.high %v386, %v386
      %390 = vst [vmem:[%s154] sm:$0xc] %v386
      %391 = vst [vmem:[%s154 + $0x8] sm:$0xc] %v387
      %v392 = vmul.f32 %v261, 2.0
      %v393 = vmul.f32 %v392, %v364
      %v394 = vmul.f32 %v392, %v261
      %v395 = vsub.f32 1.0, %v394
      %v398 = vunpack.c.l.s4 1983009808
      %v399 = vunpack.c.0.s8 %v398
      %v400 = vlaneseq
      %v401 = vshrl.u32 %v400, 7
      %v402 = vsub.s32 %v399, %v401
      %v403 = vrot.slane %v393, %v402
      %v404 = vcombine.low %v403, %v403
      %407 = vst [vmem:[%s154] sm:$0x30] %v404
      %408 = vst [vmem:[%s154 + $0x8] sm:$0x30] %v403
      %v410 = vcombine.low %v395, %v395
      %v412 = vunpack.c.l.s4 1983009808
      %v413 = vunpack.c.0.s8 %v412
      %v414 = vlaneseq
      %v415 = vshrl.u32 %v414, 7
      %v416 = vsub.s32 %v413, %v415
      %v417 = vrot.slane %v410, %v416
      %v418 = vcombine.low %v417, %v417
      %421 = vst [vmem:[%s154] sm:$0xc0] %v418
      %422 = vst [vmem:[%s154 + $0x8] sm:$0xc0] %v417
      %v423 = vmul.f32 %v393, 2.0
      %v424 = vmul.f32 %v423, %v395
      %v425 = vmul.f32 %v423, %v393
      %v426 = vsub.f32 1.0, %v425
      %v429 = vunpack.c.l.s4 1983009808
      %v430 = vunpack.c.0.s8 %v429
      %v431 = vlaneseq
      %v432 = vshrl.u32 %v431, 7
      %v433 = vsub.s32 %v430, %v432
      %v434 = vrot.slane %v424, %v433
      %v435 = vcombine.high %v434, %v434
      %438 = vst [vmem:[%s154 + $0x10] sm:$0x3] %v434
      %439 = vst [vmem:[%s154 + $0x18] sm:$0x3] %v435
      %v441 = vcombine.low %v426, %v426
      %v443 = vunpack.c.l.s4 1983009808
      %v444 = vunpack.c.0.s8 %v443
      %v445 = vlaneseq
      %v446 = vshrl.u32 %v445, 7
      %v447 = vsub.s32 %v444, %v446
      %v448 = vrot.slane %v441, %v447
      %v449 = vcombine.high %v448, %v448
      %452 = vst [vmem:[%s154 + $0x10] sm:$0xc] %v448
      %453 = vst [vmem:[%s154 + $0x18] sm:$0xc] %v449
      %v454 = vmul.f32 %v424, 2.0
      %v455 = vmul.f32 %v454, %v426
      %v456 = vmul.f32 %v454, %v424
      %v457 = vsub.f32 1.0, %v456
      %v460 = vunpack.c.l.s4 1983009808
      %v461 = vunpack.c.0.s8 %v460
      %v462 = vlaneseq
      %v463 = vshrl.u32 %v462, 7
      %v464 = vsub.s32 %v461, %v463
      %v465 = vrot.slane %v455, %v464
      %v466 = vcombine.low %v465, %v465
      %469 = vst [vmem:[%s154 + $0x10] sm:$0x30] %v466
      %470 = vst [vmem:[%s154 + $0x18] sm:$0x30] %v465
      %v472 = vcombine.low %v457, %v457
      %v474 = vunpack.c.l.s4 1983009808
      %v475 = vunpack.c.0.s8 %v474
      %v476 = vlaneseq
      %v477 = vshrl.u32 %v476, 7
      %v478 = vsub.s32 %v475, %v477
      %v479 = vrot.slane %v472, %v478
      %v480 = vcombine.low %v479, %v479
      %483 = vst [vmem:[%s154 + $0x10] sm:$0xc0] %v480
      %484 = vst [vmem:[%s154 + $0x18] sm:$0xc0] %v479
      %v485 = vmul.f32 %v455, 2.0
      %v486 = vmul.f32 %v485, %v457
      %v487 = vmul.f32 %v485, %v455
      %v488 = vsub.f32 1.0, %v487
      %v491 = vunpack.c.l.s4 1983009808
      %v492 = vunpack.c.0.s8 %v491
      %v493 = vlaneseq
      %v494 = vshrl.u32 %v493, 7
      %v495 = vsub.s32 %v492, %v494
      %v496 = vrot.slane %v486, %v495
      %v497 = vcombine.high %v496, %v496
      %500 = vst [vmem:[%s154 + $0x20] sm:$0x3] %v496
      %501 = vst [vmem:[%s154 + $0x28] sm:$0x3] %v497
      %v503 = vcombine.low %v488, %v488
      %v505 = vunpack.c.l.s4 1983009808
      %v506 = vunpack.c.0.s8 %v505
      %v507 = vlaneseq
      %v508 = vshrl.u32 %v507, 7
      %v509 = vsub.s32 %v506, %v508
      %v510 = vrot.slane %v503, %v509
      %v511 = vcombine.high %v510, %v510
      %514 = vst [vmem:[%s154 + $0x20] sm:$0xc] %v510
      %515 = vst [vmem:[%s154 + $0x28] sm:$0xc] %v511
      %s516 = smul.u32 2, %s17
      %p517 = scmp.lt.s32.totalorder %s16, 1
      %s518 = scalar_select %p517, %s16, 1
      %p519 = scmp.lt.s32.totalorder %s516, 1
      %s520 = scalar_select %p519, %s516, 1
      %s521 = smul.addr %s518, 6
      %s522 = sadd.s32 %s520, %s521
      %s523 = smul.addr %s522, 8
      %s524 = scalar_lea.vmem %s1, %s523
      // Predicated region
      $region25: #{nerf_embedding.1} parent=23 // pred_check
        %p525 = pneg %p72
      $region26: #{nerf_embedding.1} parent=23 // pred_check_branch
        %527 = sbr.rel (%p525) target = $region28
      $region27: #{nerf_embedding.1} parent=23 // pred_region
        %s528 = smul.u32 2, %s17
      $region28: #{nerf_embedding.1} parent=23 // pred_fallthru
        _
    $region24: #{nerf_embedding.1} parent=5 // pred_fallthru
      _
    %p529 = scmp.le.s32.totalorder 2, %s7
    // Predicated region
    $region29: #{nerf_embedding.1} parent=5 // pred_check
      %p530 = pneg %p529
    $region30: #{nerf_embedding.1} parent=5 // pred_check_branch
      %532 = sbr.rel (%p530) target = $region32
    $region31: #{nerf_embedding.1} parent=5 // pred_region
      %s533 = ssub.s32 %s7, 2
      // Predicated region
      $region33: #{nerf_embedding.1} parent=31 // pred_check
        %p534 = pneg %p78
      $region34: #{nerf_embedding.1} parent=31 // pred_check_branch
        %536 = sbr.rel (%p534) target = $region36
      $region35: #{nerf_embedding.1} parent=31 // pred_region
        %s537 = smul.u32 2, %s19
        %p538 = scmp.lt.s32.totalorder %s18, 1
        %s539 = scalar_select %p538, %s18, 1
        %p540 = scmp.lt.s32.totalorder %s537, 1
        %s541 = scalar_select %p540, %s537, 1
        %s542 = smul.addr %s539, 6
        %s543 = sadd.s32 %s541, %s542
        %s544 = smul.addr %s543, 8
        %s545 = scalar_lea.vmem %s1, %s544
      $region36: #{nerf_embedding.1} parent=31 // pred_fallthru
        _
    $region32: #{nerf_embedding.1} parent=5 // pred_fallthru
      _
  $region6: #{nerf_embedding.1} parent=0 // loop_footer
    %s11 = sadd.s32 1, %s7
  $region7: #{nerf_embedding.1} parent=0 // loop_footer_branch
    %6 = sbr.rel target = $region3
  $region8: #{nerf_embedding.1} parent=0 // loop_exit
    _

</llo_original>
